<compile_context>
chip_gen: v7x
topology: tpu7x:2x2x1
jax: 0.10.0
libtpu: 0.0.40
codegen_flags: <defaults>
</compile_context>

<pallas_src>
import math

import numpy as np
import jax
import jax.numpy as jnp
from jax.experimental import pallas as pl
from jax.experimental.pallas import tpu as pltpu


def _pos_enc_kernel(invfx_ref, invfy_ref, off_ref, pos_ref, o_ref):
    """One (TC, TP) tile of the positional-encoding image.

    invfx_ref, invfy_ref, off_ref : (TC, 1) f32 per-channel tables
    pos_ref                       : (2, TP) f32 rows = [x coord; y coord] per pixel
    o_ref                         : (TC, TP)  output tile (lane-dense pixels)
    """
    xpos = pos_ref[0:1, :]                       # (1, TP)
    ypos = pos_ref[1:2, :]                       # (1, TP)
    # cos(z) == sin(z + pi/2); the x/y selector is pre-folded into the two
    # frequency tables, so each element costs 2 mul + 2 add + 1 sin.
    phase = invfx_ref[...] * xpos + invfy_ref[...] * ypos + off_ref[...]
    o_ref[...] = jnp.sin(phase).astype(o_ref.dtype)


def _pick_tile(dim, unit, cap):
    if dim <= cap:
        return dim                               # full-extent block is always legal
    return max(unit, (cap // unit) * unit)       # else multiple of (8 | 128)


def positional_encoding_permute_2d(x_nchw):
    """Pallas equivalent of PositionalEncodingPermute2D(C)(x) for x: (B, C, X, Y)."""
    if x_nchw.ndim != 4:
        raise RuntimeError('The input tensor has to be 4d!')
    B, C, X, Y = x_nchw.shape
    enc_c = int(math.ceil(C / 2))
    half = (enc_c + 1) // 2
    if 2 * half != enc_c:
        # The PyTorch reference also fails (broadcast error) in this case.
        raise ValueError('ceil(channels/2) must be even')

    # ---- tiny host-side lookup tables (shape-only, deterministic) ----------
    c_idx = np.arange(C)
    is_x = c_idx < enc_c                              # x-encoded vs y-encoded channel
    local = np.where(is_x, c_idx, c_idx - enc_c)
    is_sin = local < half                             # sin vs cos channel
    fidx = np.where(is_sin, local, local - half).astype(np.float32)
    inv_f = (10000.0 ** (-2.0 * fidx / enc_c)).astype(np.float32)

    inv_f_x = jnp.asarray(np.where(is_x, inv_f, 0.0).astype(np.float32).reshape(C, 1))
    inv_f_y = jnp.asarray(np.where(is_x, 0.0, inv_f).astype(np.float32).reshape(C, 1))
    phase_off = jnp.asarray(
        np.where(is_sin, 0.0, np.pi / 2.0).astype(np.float32).reshape(C, 1))

    P = X * Y                                         # flattened pixel index p = x*Y + y
    pos_tab = jnp.asarray(np.stack(
        [np.repeat(np.arange(X, dtype=np.float32), Y),
         np.tile(np.arange(Y, dtype=np.float32), X)], axis=0))       # (2, P)

    # ---- tiling: channels on sublanes, flattened pixels on the lane axis ----
    TC = _pick_tile(C, 8, 256)
    TP = _pick_tile(P, 128, 4096)      # <= 4 MiB f32 output block, 8 MiB d-buffered
    # v7x has 2 TensorCores sharing HBM: if the parallel grid collapses to one
    # tile, split the pixel axis so both cores get work (no-op on v5e/v6e).
    if pl.cdiv(C, TC) == 1 and pl.cdiv(P, TP) == 1 and P >= 2 * 128:
        TP = ((pl.cdiv(P, 2) + 127) // 128) * 128
    grid = (pl.cdiv(C, TC), pl.cdiv(P, TP))

    enc = pl.pallas_call(
        _pos_enc_kernel,
        out_shape=jax.ShapeDtypeStruct((C, P), x_nchw.dtype),
        grid=grid,
        in_specs=[
            pl.BlockSpec((TC, 1), lambda ci, pi: (ci, 0)),
            pl.BlockSpec((TC, 1), lambda ci, pi: (ci, 0)),
            pl.BlockSpec((TC, 1), lambda ci, pi: (ci, 0)),
            pl.BlockSpec((2, TP), lambda ci, pi: (0, pi)),
        ],
        out_specs=pl.BlockSpec((TC, TP), lambda ci, pi: (ci, pi)),
        compiler_params=pltpu.CompilerParams(
            dimension_semantics=("parallel", "parallel")),
    )(inv_f_x, inv_f_y, phase_off, pos_tab)

    # The encoding is identical for every batch element: repeat it for free
    # outside the kernel (XLA can fuse the broadcast into the consumer instead
    # of writing B copies to HBM).  (C, X*Y) -> (1, C, X, Y) -> (B, C, X, Y).
    return jnp.broadcast_to(enc.reshape(1, C, X, Y), (B, C, X, Y))


def _reference(x_nchw_np):
    """Pure-numpy transcription of the PyTorch module (for verification)."""
    B, C, X, Y = x_nchw_np.shape
    enc_c = int(np.ceil(C / 2))
    inv_freq = 1.0 / (10000.0 ** (np.arange(0, enc_c, 2, dtype=np.float32) / enc_c))
    pos_x = np.arange(X, dtype=np.float32)
    pos_y = np.arange(Y, dtype=np.float32)
    sx = np.einsum('i,j->ij', pos_x, inv_freq)
    sy = np.einsum('i,j->ij', pos_y, inv_freq)
    emb_x = np.concatenate([np.sin(sx), np.cos(sx)], axis=-1)[:, None, :]
    emb_y = np.concatenate([np.sin(sy), np.cos(sy)], axis=-1)
    emb = np.zeros((X, Y, 2 * enc_c), dtype=np.float32)
    emb[:, :, :enc_c] = emb_x
    emb[:, :, enc_c:2 * enc_c] = emb_y
    enc = np.broadcast_to(emb[None, :, :, :C], (B, X, Y, C))
    return np.transpose(enc, (0, 3, 1, 2)).astype(np.float32)


if __name__ == "__main__":
    # Deterministic example input: (batch=2, channels=4, x=16, y=16).
    x = jax.random.normal(jax.random.PRNGKey(0), (2, 4, 16, 16), jnp.float32)

    out = positional_encoding_permute_2d(x)
    out = jax.block_until_ready(out)

    assert out.shape == x.shape, out.shape
    assert bool(jnp.all(jnp.isfinite(out)))

    ref = jnp.asarray(_reference(np.asarray(x)))
    max_err = float(jnp.max(jnp.abs(out - ref)))
    assert bool(jnp.allclose(out, ref, atol=5e-5, rtol=5e-5)), max_err

    print("KERNEL_OK")
</pallas_src>

<mosaic_0001>
module attributes {stable_mosaic.version = 11 : i64} {
  func.func @_pos_enc_kernel(%arg0: i32, %arg1: i32, %arg2: memref<4x1xf32, #tpu.memory_space<vmem>>, %arg3: memref<4x1xf32, #tpu.memory_space<vmem>>, %arg4: memref<4x1xf32, #tpu.memory_space<vmem>>, %arg5: memref<2x128xf32, #tpu.memory_space<vmem>>, %arg6: memref<4x128xf32, #tpu.memory_space<vmem>>) attributes {dimension_semantics = [#tpu.dimension_semantics<parallel>, #tpu.dimension_semantics<parallel>], iteration_bounds = array<i64: 1, 2>, scalar_prefetch = 0 : i64, scratch_operands = 0 : i64, tpu.core_type = #tpu.core_type<tc>, window_params = [{transform_indices = @transform_0, window_bounds = array<i64: 4, 1>}, {transform_indices = @transform_1, window_bounds = array<i64: 4, 1>}, {transform_indices = @transform_2, window_bounds = array<i64: 4, 1>}, {transform_indices = @transform_3, window_bounds = array<i64: 2, 128>}, {transform_indices = @transform_4, window_bounds = array<i64: 4, 128>}]} {
    %c0 = arith.constant 0 : index
    %c0_0 = arith.constant 0 : index
    %0 = vector.load %arg5[%c0, %c0_0] : memref<2x128xf32, #tpu.memory_space<vmem>>, vector<1x128xf32>
    %c1 = arith.constant 1 : index
    %c0_1 = arith.constant 0 : index
    %1 = vector.load %arg5[%c1, %c0_1] : memref<2x128xf32, #tpu.memory_space<vmem>>, vector<1x128xf32>
    %c0_2 = arith.constant 0 : index
    %c0_3 = arith.constant 0 : index
    %2 = vector.load %arg2[%c0_2, %c0_3] : memref<4x1xf32, #tpu.memory_space<vmem>>, vector<4x1xf32>
    %3 = vector.broadcast %2 : vector<4x1xf32> to vector<4x128xf32>
    %4 = vector.broadcast %0 : vector<1x128xf32> to vector<4x128xf32>
    %5 = arith.mulf %3, %4 : vector<4x128xf32>
    %c0_4 = arith.constant 0 : index
    %c0_5 = arith.constant 0 : index
    %6 = vector.load %arg3[%c0_4, %c0_5] : memref<4x1xf32, #tpu.memory_space<vmem>>, vector<4x1xf32>
    %7 = vector.broadcast %6 : vector<4x1xf32> to vector<4x128xf32>
    %8 = vector.broadcast %1 : vector<1x128xf32> to vector<4x128xf32>
    %9 = arith.mulf %7, %8 : vector<4x128xf32>
    %10 = arith.addf %5, %9 : vector<4x128xf32>
    %c0_6 = arith.constant 0 : index
    %c0_7 = arith.constant 0 : index
    %11 = vector.load %arg4[%c0_6, %c0_7] : memref<4x1xf32, #tpu.memory_space<vmem>>, vector<4x1xf32>
    %12 = vector.broadcast %11 : vector<4x1xf32> to vector<4x128xf32>
    %13 = arith.addf %10, %12 : vector<4x128xf32>
    %14 = math.sin %13 : vector<4x128xf32>
    %c0_8 = arith.constant 0 : index
    %c0_9 = arith.constant 0 : index
    %15 = vector.load %arg6[%c0_8, %c0_9] : memref<4x128xf32, #tpu.memory_space<vmem>>, vector<4x128xf32>
    tpu.vector_store %arg6[%c0_8, %c0_9], %14 {strides = array<i32>} : memref<4x128xf32, #tpu.memory_space<vmem>>, vector<4x128xf32>,
    return
  }
  func.func @transform_0(%arg0: i32, %arg1: i32) -> (i32, i32) {
    %c0_i32 = arith.constant 0 : i32
    %c0_i32_0 = arith.constant 0 : i32
    return %arg0, %c0_i32 : i32, i32
  }
  func.func @transform_1(%arg0: i32, %arg1: i32) -> (i32, i32) {
    %c0_i32 = arith.constant 0 : i32
    %c0_i32_0 = arith.constant 0 : i32
    return %arg0, %c0_i32 : i32, i32
  }
  func.func @transform_2(%arg0: i32, %arg1: i32) -> (i32, i32) {
    %c0_i32 = arith.constant 0 : i32
    %c0_i32_0 = arith.constant 0 : i32
    return %arg0, %c0_i32 : i32, i32
  }
  func.func @transform_3(%arg0: i32, %arg1: i32) -> (i32, i32) {
    %c0_i32 = arith.constant 0 : i32
    %c0_i32_0 = arith.constant 0 : i32
    return %c0_i32, %arg1 : i32, i32
  }
  func.func @transform_4(%arg0: i32, %arg1: i32) -> (i32, i32) {
    %c0_i32 = arith.constant 0 : i32
    return %arg0, %arg1 : i32, i32
  }
}

</mosaic_0001>

<llo_original>
// kernel: tpu_custom_call.1
$region0: #{tpu_custom_call.1}
  #allocation0 [shape = 'u32[]', space=smem, size = 0x4, offset = 0x4, fixed_abs, tag = 'smem constant byte address 0x4 - core index']
  #allocation1 [shape = 'u32[144,128]{1,0:T(1,128)}', space=vmem, size = 0x12000, scoped, tag = 'internal scratch']
  %s0 = inlined_call_operand.vmem [shape: f32[4,1], index: 0, kind: input, shape index: {}]
  %s1 = inlined_call_operand.vmem [shape: f32[4,1], index: 1, kind: input, shape index: {}]
  %s2 = inlined_call_operand.vmem [shape: f32[4,1], index: 2, kind: input, shape index: {}]
  %s3 = inlined_call_operand.vmem [shape: f32[2,256], index: 3, kind: input, shape index: {}]
  %s4 = inlined_call_operand.hbm [shape: f32[4,256], index: 4, kind: output, shape index: {}]
  %s5 = sld [smem:[#allocation0]]
  $region49: #{tpu_custom_call.1} parent=0
    _
  %s7 = ssub.s32 1, %s5
  %s8 = scalar_select 0, %s7, %s5
  $region1: #{tpu_custom_call.1} parent=0
    #allocation2 [shape = 'u8[4096]{0}', space=vmem, size = 0x1000, scoped, tag = 'output window, operand 0']
    #allocation3 [shape = 's32[2]{0}', space=sflag, size = 0x8, scoped, tag = 'scoped memory for tpu_custom_call.1']
    %9 = vsyncpa [#allocation3], 0
    %s10 = scalar_lea.sflag [#allocation3], 1
    %11 = vsyncpa %s10, 0
    loop: start=0, step=1, limit=4
    $region2: #{tpu_custom_call.1} parent=1 // loop_pre_header
      _
    $region3: #{tpu_custom_call.1} parent=1 // loop_header
      %s13 = sphi 0, %s17
      %p14 = scmp.ge.s32.totalorder %s13, 4
      %s20 = sphi 0, %s32
      %s21 = sphi 0, %s28
      %s22 = sphi 0, %s20
      %s23 = sphi 0, %s21
      %s24 = sphi 0, %s22
      %s25 = sphi 0, %s23
      %s35 = sphi 0, %s37
      %s38 = sphi 0, %s35
      %s39 = sphi 0, %s38
      %s55 = sphi 0, %s39
      %s61 = sphi 0, %s63
      %s64 = sphi 0, %s61
      %s65 = sphi 0, %s64
      %s81 = sphi 0, %s65
      %s87 = sphi 0, %s89
      %s90 = sphi 0, %s87
      %s91 = sphi 0, %s90
      %s107 = sphi 0, %s91
      %s113 = sphi 0, %s115
      %s116 = sphi 0, %s113
      %s117 = sphi 0, %s116
      %s133 = sphi 0, %s117
      %s141 = sphi 0, %s143
      %s144 = sphi 0, %s141
      %s145 = sphi 0, %s144
      %s161 = sphi 0, %s145
    $region4: #{tpu_custom_call.1} parent=1 // loop_header_branch
      %16 = sbr.rel (%p14) target = $region8
    $region5: #{tpu_custom_call.1} parent=1 // loop_body
      %s18 = ssub.s32 %s13, 1
      %s19 = ssub.s32 %s13, 2
      %s26 = sadd.s32 1, %s21
      %p27 = scmp.ge.s32.totalorder %s26, 2
      %s28 = scalar_select %p27, 0, %s26
      %s29 = sadd.s32 1, %s20
      %s30 = scalar_select %p27, %s29, %s20
      %p31 = scmp.ge.s32.totalorder %s30, 1
      %s32 = scalar_select %p31, 0, %s30
      %s33 = ssub.s32 %s20, %s32
      %p34 = scmp.eq.s32.totalorder %s33, 0
      %s36 = sadd.s32 %s35, 1
      %s37 = scalar_select %p34, %s35, %s36
      %p40 = pneg %p34
      %p41 = scmp.eq.s32.totalorder %s13, 1
      %p42 = por %p40, %p41
      %p43 = scmp.ne.s32.totalorder %s35, %s38
      %p44 = scmp.eq.s32.totalorder %s13, 0
      %p45 = por %p43, %p44
      %p46 = scmp.ne.s32.totalorder %s35, %s38
      %p47 = scmp.eq.s32.totalorder %s18, 1
      %p48 = por %p46, %p47
      %p49 = scmp.ne.s32.totalorder %s38, %s39
      %p50 = scmp.eq.s32.totalorder %s18, 0
      %p51 = por %p49, %p50
      %p52 = scmp.ne.s32.totalorder %s38, %s39
      %p53 = scmp.eq.s32.totalorder %s19, 1
      %p54 = por %p52, %p53
      %p56 = scmp.ne.s32.totalorder %s39, %s55
      %p57 = scmp.eq.s32.totalorder %s19, 0
      %p58 = por %p56, %p57
      %s59 = ssub.s32 %s20, %s32
      %p60 = scmp.eq.s32.totalorder %s59, 0
      %s62 = sadd.s32 %s61, 1
      %s63 = scalar_select %p60, %s61, %s62
      %p66 = pneg %p60
      %p67 = scmp.eq.s32.totalorder %s13, 1
      %p68 = por %p66, %p67
      %p69 = scmp.ne.s32.totalorder %s61, %s64
      %p70 = scmp.eq.s32.totalorder %s13, 0
      %p71 = por %p69, %p70
      %p72 = scmp.ne.s32.totalorder %s61, %s64
      %p73 = scmp.eq.s32.totalorder %s18, 1
      %p74 = por %p72, %p73
      %p75 = scmp.ne.s32.totalorder %s64, %s65
      %p76 = scmp.eq.s32.totalorder %s18, 0
      %p77 = por %p75, %p76
      %p78 = scmp.ne.s32.totalorder %s64, %s65
      %p79 = scmp.eq.s32.totalorder %s19, 1
      %p80 = por %p78, %p79
      %p82 = scmp.ne.s32.totalorder %s65, %s81
      %p83 = scmp.eq.s32.totalorder %s19, 0
      %p84 = por %p82, %p83
      %s85 = ssub.s32 %s20, %s32
      %p86 = scmp.eq.s32.totalorder %s85, 0
      %s88 = sadd.s32 %s87, 1
      %s89 = scalar_select %p86, %s87, %s88
      %p92 = pneg %p86
      %p93 = scmp.eq.s32.totalorder %s13, 1
      %p94 = por %p92, %p93
      %p95 = scmp.ne.s32.totalorder %s87, %s90
      %p96 = scmp.eq.s32.totalorder %s13, 0
      %p97 = por %p95, %p96
      %p98 = scmp.ne.s32.totalorder %s87, %s90
      %p99 = scmp.eq.s32.totalorder %s18, 1
      %p100 = por %p98, %p99
      %p101 = scmp.ne.s32.totalorder %s90, %s91
      %p102 = scmp.eq.s32.totalorder %s18, 0
      %p103 = por %p101, %p102
      %p104 = scmp.ne.s32.totalorder %s90, %s91
      %p105 = scmp.eq.s32.totalorder %s19, 1
      %p106 = por %p104, %p105
      %p108 = scmp.ne.s32.totalorder %s91, %s107
      %p109 = scmp.eq.s32.totalorder %s19, 0
      %p110 = por %p108, %p109
      %s111 = ssub.s32 %s21, %s28
      %p112 = scmp.eq.s32.totalorder %s111, 0
      %s114 = sadd.s32 %s113, 1
      %s115 = scalar_select %p112, %s113, %s114
      %p118 = pneg %p112
      %p119 = scmp.eq.s32.totalorder %s13, 1
      %p120 = por %p118, %p119
      %p121 = scmp.ne.s32.totalorder %s113, %s116
      %p122 = scmp.eq.s32.totalorder %s13, 0
      %p123 = por %p121, %p122
      %p124 = scmp.ne.s32.totalorder %s113, %s116
      %p125 = scmp.eq.s32.totalorder %s18, 1
      %p126 = por %p124, %p125
      %p127 = scmp.ne.s32.totalorder %s116, %s117
      %p128 = scmp.eq.s32.totalorder %s18, 0
      %p129 = por %p127, %p128
      %p130 = scmp.ne.s32.totalorder %s116, %s117
      %p131 = scmp.eq.s32.totalorder %s19, 1
      %p132 = por %p130, %p131
      %p134 = scmp.ne.s32.totalorder %s117, %s133
      %p135 = scmp.eq.s32.totalorder %s19, 0
      %p136 = por %p134, %p135
      %s137 = ssub.s32 %s20, %s32
      %s138 = ssub.s32 %s21, %s28
      %s139 = sor.u32 %s137, %s138
      %p140 = scmp.eq.s32.totalorder %s139, 0
      %s142 = sadd.s32 %s141, 1
      %s143 = scalar_select %p140, %s141, %s142
      %p146 = pneg %p140
      %p147 = scmp.eq.s32.totalorder %s13, 1
      %p148 = por %p146, %p147
      %p149 = scmp.ne.s32.totalorder %s141, %s144
      %p150 = scmp.eq.s32.totalorder %s13, 0
      %p151 = por %p149, %p150
      %p152 = scmp.ne.s32.totalorder %s141, %s144
      %p153 = scmp.eq.s32.totalorder %s18, 1
      %p154 = por %p152, %p153
      %p155 = scmp.ne.s32.totalorder %s144, %s145
      %p156 = scmp.eq.s32.totalorder %s18, 0
      %p157 = por %p155, %p156
      %p158 = scmp.ne.s32.totalorder %s144, %s145
      %p159 = scmp.eq.s32.totalorder %s19, 1
      %p160 = por %p158, %p159
      %p162 = scmp.ne.s32.totalorder %s145, %s161
      %p163 = scmp.eq.s32.totalorder %s19, 0
      %p164 = por %p162, %p163
      %p165 = scmp.le.s32.totalorder 1, %s13
      %p166 = scmp.lt.s32.totalorder %s13, 3
      %p167 = pnand %p165, %p166
      %p168 = pneg %p167
      // Predicated region
      $region9: #{tpu_custom_call.1} parent=5 // pred_check
        _
      $region10: #{tpu_custom_call.1} parent=5 // pred_check_branch
        %170 = sbr.rel (%p167) target = $region12
      $region11: #{tpu_custom_call.1} parent=5 // pred_region
        %s171 = ssub.s32 %s13, 1
        // Predicated region
        $region13: #{tpu_custom_call.1} parent=11 // pred_check
          %p172 = pneg %p51
        $region14: #{tpu_custom_call.1} parent=11 // pred_check_branch
          %174 = sbr.rel (%p172) target = $region16
        $region15: #{tpu_custom_call.1} parent=11 // pred_region
          %p175 = scmp.lt.s32.totalorder %s22, 0
          %s176 = scalar_select %p175, %s22, 0
          %s177 = smul.addr %s176, 4
          %s178 = scalar_lea.vmem %s0, %s177
        $region16: #{tpu_custom_call.1} parent=11 // pred_fallthru
          _
        // Predicated region
        $region17: #{tpu_custom_call.1} parent=11 // pred_check
          %p179 = pneg %p77
        $region18: #{tpu_custom_call.1} parent=11 // pred_check_branch
          %181 = sbr.rel (%p179) target = $region20
        $region19: #{tpu_custom_call.1} parent=11 // pred_region
          %p182 = scmp.lt.s32.totalorder %s22, 0
          %s183 = scalar_select %p182, %s22, 0
          %s184 = smul.addr %s183, 4
          %s185 = scalar_lea.vmem %s1, %s184
        $region20: #{tpu_custom_call.1} parent=11 // pred_fallthru
          _
        // Predicated region
        $region21: #{tpu_custom_call.1} parent=11 // pred_check
          %p186 = pneg %p103
        $region22: #{tpu_custom_call.1} parent=11 // pred_check_branch
          %188 = sbr.rel (%p186) target = $region24
        $region23: #{tpu_custom_call.1} parent=11 // pred_region
          %p189 = scmp.lt.s32.totalorder %s22, 0
          %s190 = scalar_select %p189, %s22, 0
          %s191 = smul.addr %s190, 4
          %s192 = scalar_lea.vmem %s2, %s191
        $region24: #{tpu_custom_call.1} parent=11 // pred_fallthru
          _
      $region12: #{tpu_custom_call.1} parent=5 // pred_fallthru
        _
      %p193 = scmp.lt.s32.totalorder %s13, 2
      // Predicated region
      $region25: #{tpu_custom_call.1} parent=5 // pred_check
        %p194 = pneg %p193
      $region26: #{tpu_custom_call.1} parent=5 // pred_check_branch
        %196 = sbr.rel (%p194) target = $region28
      $region27: #{tpu_custom_call.1} parent=5 // pred_region
        // Predicated region
        $region29: #{tpu_custom_call.1} parent=27 // pred_check
          %p197 = pneg %p123
        $region30: #{tpu_custom_call.1} parent=27 // pred_check_branch
          %199 = sbr.rel (%p197) target = $region32
        $region31: #{tpu_custom_call.1} parent=27 // pred_region
          %p200 = scmp.lt.s32.totalorder %s21, 1
          %s201 = scalar_select %p200, %s21, 1
          %s202 = smul.addr %s201, 2
          %s203 = scalar_lea.vmem %s3, %s202
        $region32: #{tpu_custom_call.1} parent=27 // pred_fallthru
          _
      $region28: #{tpu_custom_call.1} parent=5 // pred_fallthru
        _
      %p204 = scmp.le.s32.totalorder 1, %s13
      %p205 = scmp.lt.s32.totalorder %s13, 3
      %p206 = pnand %p204, %p205
      %p207 = pneg %p206
      // Predicated region
      $region33: #{tpu_custom_call.1} parent=5 // pred_check
        _
      $region34: #{tpu_custom_call.1} parent=5 // pred_check_branch
        %209 = sbr.rel (%p206) target = $region36
      $region35: #{tpu_custom_call.1} parent=5 // pred_region
        %s210 = ssub.s32 %s13, 1
        %p211 = scmp.lt.s32.totalorder %s22, 0
        %s212 = scalar_select %p211, %s22, 0
        %s213 = smul.addr %s212, 4
        %s214 = scalar_lea.vmem %s0, %s213
        %p215 = pneg %p51
        %p216 = pneg %p48
        %p217 = scmp.lt.s32.totalorder %s22, 0
        %s218 = scalar_select %p217, %s22, 0
        %s219 = smul.addr %s218, 4
        %s220 = scalar_lea.vmem %s1, %s219
        %p221 = pneg %p77
        %p222 = pneg %p74
        %p223 = scmp.lt.s32.totalorder %s22, 0
        %s224 = scalar_select %p223, %s22, 0
        %s225 = smul.addr %s224, 4
        %s226 = scalar_lea.vmem %s2, %s225
        %p227 = pneg %p103
        %p228 = pneg %p100
        %p229 = scmp.lt.s32.totalorder %s23, 1
        %s230 = scalar_select %p229, %s23, 1
        %s231 = smul.addr %s230, 2
        %s232 = scalar_lea.vmem %s3, %s231
        %p233 = pneg %p129
        %p234 = pneg %p126
        %p235 = pneg %p157
        %p236 = pneg %p154
        %s237 = sand.u32 %s144, 1
        %s238 = scalar_lea.sflag [#allocation3], %s237
        %s239 = sand.u32 %s144, 1
        %s240 = smul.addr %s239, 4
        %s241 = scalar_lea.vmem [#allocation2], %s240
        %p242 = scmp.lt.s32.totalorder %s22, 0
        %s243 = scalar_select %p242, %s22, 0
        %s244 = smul.addr %s243, 4
        %s245 = scalar_lea.vmem %s0, %s244
        %p246 = scmp.lt.s32.totalorder %s22, 0
        %s247 = scalar_select %p246, %s22, 0
        %s248 = smul.addr %s247, 4
        %s249 = scalar_lea.vmem %s1, %s248
        %p250 = scmp.lt.s32.totalorder %s22, 0
        %s251 = scalar_select %p250, %s22, 0
        %s252 = smul.addr %s251, 4
        %s253 = scalar_lea.vmem %s2, %s252
        %p254 = scmp.lt.s32.totalorder %s23, 1
        %s255 = scalar_select %p254, %s23, 1
        %s256 = smul.addr %s255, 2
        %s257 = scalar_lea.vmem %s3, %s256
        %v258 = vld [vmem:[%s257] sm:$0x1]
        %v259 = vld [vmem:[%s257 + $0x1] sm:$0x1]
        %v260 = vld [vmem:[%s245] sm:$0xf]
        %262 = vset.pattern.permute.xlu0 0
        %263 = vperm.xlu0 %262, %v260
        %v264 = vpop.permute.xlu0 %263
        %v266 = vlaneseq
        %v267 = vshrl.u32 %v266, 7
        %v268 = vsub.s32 0, %v267
        %v269 = vrot.slane %v258, %v268
        %v270 = vmul.f32 %v264, %v269
        %v271 = vld [vmem:[%s249] sm:$0xf]
        %273 = vset.pattern.permute.xlu0 0
        %274 = vperm.xlu0 %273, %v271
        %v275 = vpop.permute.xlu0 %274
        %v277 = vlaneseq
        %v278 = vshrl.u32 %v277, 7
        %v279 = vsub.s32 0, %v278
        %v280 = vrot.slane %v259, %v279
        %v281 = vmul.f32 %v275, %v280
        %v282 = vadd.f32 %v270, %v281
        %v283 = vld [vmem:[%s253] sm:$0xf]
        %285 = vset.pattern.permute.xlu0 0
        %286 = vperm.xlu0 %285, %v283
        %v287 = vpop.permute.xlu0 %286
        %v289 = vadd.f32 %v282, %v287
        %v290 = vand.u32 2147483647, %v289
        %vm291 = vcmp.le.f32.partialorder %v290, 0.7853982
        %vm292 = vcmp.lt.s32.totalorder %v289, 0
        %v293 = vand.u32 %v289, 2139095040
        %v294 = vshrl.u32 %v293, 23
        %v295 = vsub.s32 %v294, 127
        %v296 = vand.u32 2147483647, %v289
        %v297 = vand.u32 %v296, 8388607
        %v298 = vor.u32 %v297, 8388608
        %v299 = vsub.s32 0, %v298
        %v300 = vadd.s32 %v295, 1
        %vm301 = vcmp.gt.s32.totalorder %v300, 0
        %v302 = vsel %vm301, %v300, 0
        %v303 = vshrl.u32 %v302, 5
        %v304 = vand.u32 %v302, 31
        %v305 = vsub.s32 32, %v304
        %v306 = vshrl.u32 683565275, %v305
        %v307 = vshll.u32 683565275, %v304
        %v308 = vshrl.u32 2475754826, %v305
        %v309 = vor.u32 %v307, %v308
        %v310 = vshll.u32 2475754826, %v304
        %v311 = vshrl.u32 2131351028, %v305
        %v312 = vor.u32 %v310, %v311
        %v313 = vshll.u32 2131351028, %v304
        %v314 = vshrl.u32 2102212464, %v305
        %v315 = vor.u32 %v313, %v314
        %v316 = vshll.u32 2102212464, %v304
        %v317 = vshrl.u32 920167782, %v305
        %v318 = vor.u32 %v316, %v317
        %v319 = vshll.u32 920167782, %v304
        %v320 = vshrl.u32 1326507024, %v305
        %v321 = vor.u32 %v319, %v320
        %vm322 = vcmp.lt.s32.totalorder %v303, 1
        %vm323 = vcmp.lt.s32.totalorder %v303, 2
        %vm324 = vcmp.lt.s32.totalorder %v303, 3
        %vm325 = vcmp.lt.s32.totalorder %v303, 4
        %v326 = vsel %vm322, %v306, %v309
        %v327 = vsel %vm325, %v315, 2102212464
        %v328 = vsel %vm324, %v312, %v327
        %v329 = vsel %vm323, %v326, %v328
        %v330 = vsel %vm322, %v309, %v312
        %v331 = vsel %vm325, %v318, 920167782
        %v332 = vsel %vm324, %v315, %v331
        %v333 = vsel %vm323, %v330, %v332
        %v334 = vsel %vm322, %v312, %v315
        %v335 = vsel %vm325, %v321, 1326507024
        %v336 = vsel %vm324, %v318, %v335
        %v337 = vsel %vm323, %v334, %v336
        %v338 = vshll.u32 %v298, 8
        %v339 = vmul.u32.u64.compose %v338, %v337
        %v340 = vextract.low.u32 %v339
        %v341 = vextract.high.u32 %v339
        %v342 = vmul.u32.u64.compose %v338, %v333
        %v343 = vextract.low.u32 %v342
        %v344 = vextract.high.u32 %v342
        %v345 = vmul.u32 %v338, %v329
        %v346 = vadd.s32 %v341, %v343
        %vm347 = vc.u32 %v341, %v343
        %v348 = vadd.s32 %v344, 1
        %v349 = vsel %vm347, %v348, %v344
        %v350 = vadd.s32 %v345, %v349
        %v351 = vadd.s32 %v350, 536870912
        %v352 = vshrl.u32 %v351, 30
        %v353 = vshll.u32 %v352, 30
        %v354 = vsub.s32 %v350, %v353
        %vm355 = vcmp.lt.s32.totalorder %v354, 0
        %v356 = vsub.s32 0, %v354
        %v357 = vsel %vm355, %v356, %v354
        %v358 = vclz %v357
        %v359 = vsub.s32 %v358, 2
        %vm360 = vcmp.gt.s32.totalorder 0, %v359
        %v361 = vsel %vm360, 0, %v359
        %v362 = vsub.s32 32, %v361
        %v363 = vshll.u32 %v354, %v361
        %v364 = vshrl.u32 %v346, %v362
        %v365 = vor.u32 %v363, %v364
        %v366 = vsub.s32 4294967266, %v361
        %v367 = vadd.s32 %v366, 127
        %v368 = vshll.u32 %v367, 23
        %v369 = vor.u32 4788187, %v368
        %v370 = vand.u32 2147483647, %v369
        %v372 = vcvt.s32.f32 %v365
        %v373 = vmul.f32 %v372, %v370
        %v374 = vxor.u32 %v373, 2147483648
        %v375 = vsel %vm292, %v374, %v373
        %v376 = vsub.s32 4, %v352
        %v377 = vsel %vm292, %v376, %v352
        %v378 = vsel %vm291, %v289, %v375
        %v379 = vsel %vm291, 0, %v377
        %v380 = vcosq.f32.pop %v378
        %v381 = vsinq.f32.pop %v378
        %vm382 = vweird.f32 %v289
        %v383 = vadd.s32 %v379, 3
        %v384 = vand.u32 %v383, 3
        %vm385 = vcmp.lt.s32.totalorder %v384, 2
        %vm386 = vcmp.eq.s32.totalorder %v384, 0
        %v387 = vxor.u32 %v381, 2147483648
        %v388 = vsel %vm386, %v380, %v387
        %vm389 = vcmp.eq.s32.totalorder %v384, 2
        %v390 = vxor.u32 %v380, 2147483648
        %v391 = vsel %vm389, %v390, %v381
        %v392 = vsel %vm385, %v388, %v391
        %v393 = vsel %vm382, nan, %v392
        %394 = vst [vmem:[%s241] sm:$0xf] %v393
        %s395 = sand.u32 %s144, 1
        %s396 = scalar_lea.sflag [#allocation3], %s395
        %s397 = sand.u32 %s144, 1
        %s398 = smul.addr %s397, 4
        %s399 = scalar_lea.vmem [#allocation2], %s398
        // Predicated region
        $region37: #{tpu_custom_call.1} parent=35 // pred_check
          %p400 = pneg %p154
        $region38: #{tpu_custom_call.1} parent=35 // pred_check_branch
          %402 = sbr.rel (%p400) target = $region40
        $region39: #{tpu_custom_call.1} parent=35 // pred_region
          %s404 = ssub.s32 64, 64
          %405 = vsyncadd %s396, %s404
          %s406 = smul.addr %s22, 2
          %s407 = sadd.s32 %s23, %s406
          %s408 = smul.addr %s407, 64
          %s409 = scalar_lea.hbm %s4, %s408
          %s411 = sshll.u32 %s399, 4
          %s412 = int_to_ptr.vmem [resolvable:$true] %s411
          %414 = dma.vmem_to_hbm [thread:$0]  %s412, 64, %s409, %s396
        $region40: #{tpu_custom_call.1} parent=35 // pred_fallthru
          _
      $region36: #{tpu_custom_call.1} parent=5 // pred_fallthru
        _
      %p415 = scmp.le.s32.totalorder 2, %s13
      // Predicated region
      $region41: #{tpu_custom_call.1} parent=5 // pred_check
        %p416 = pneg %p415
      $region42: #{tpu_custom_call.1} parent=5 // pred_check_branch
        %418 = sbr.rel (%p416) target = $region44
      $region43: #{tpu_custom_call.1} parent=5 // pred_region
        %s419 = ssub.s32 %s13, 2
        // Predicated region
        $region45: #{tpu_custom_call.1} parent=43 // pred_check
          %p420 = pneg %p160
        $region46: #{tpu_custom_call.1} parent=43 // pred_check_branch
          %422 = sbr.rel (%p420) target = $region48
        $region47: #{tpu_custom_call.1} parent=43 // pred_region
          %s423 = sand.u32 %s145, 1
          %s424 = scalar_lea.sflag [#allocation3], %s423
          %s425 = sand.u32 %s145, 1
          %s426 = smul.addr %s425, 4
          %s427 = scalar_lea.vmem [#allocation2], %s426
          %428 = dma.done %s424, 64
        $region48: #{tpu_custom_call.1} parent=43 // pred_fallthru
          _
      $region44: #{tpu_custom_call.1} parent=5 // pred_fallthru
        _
    $region6: #{tpu_custom_call.1} parent=1 // loop_footer
      %s17 = sadd.s32 1, %s13
    $region7: #{tpu_custom_call.1} parent=1 // loop_footer_branch
      %12 = sbr.rel target = $region3
    $region8: #{tpu_custom_call.1} parent=1 // loop_exit
      _
    %429 = vsyncpa [#allocation3], 1
    %s430 = scalar_lea.sflag [#allocation3], 1
    %431 = vsyncpa %s430, 1

</llo_original>
